<compile_context>
chip_gen: v7x
topology: tpu7x:2x2x1
jax: 0.10.0
libtpu: 0.0.40
codegen_flags: <defaults>
</compile_context>

<pallas_src>
import math

import jax
import jax.numpy as jnp
from jax import lax
from jax.experimental import pallas as pl
from jax.experimental.pallas import tpu as pltpu


# ---------------------------------------------------------------------------
# Kernel 1: cc_projection
# ---------------------------------------------------------------------------
def _cc_projection_kernel(t_ref, c_ref, wc_ref, wt_ref, b_ref, o_ref):
    # MXU: bf16 x bf16 on the wide, 128-aligned contraction, f32 accumulate.
    acc = jnp.dot(c_ref[...], wc_ref[...], preferred_element_type=jnp.float32)
    acc = acc + b_ref[...]                       # (N, Dout) + (1, Dout)

    # T-path: per-row rank-1 updates driven by SMEM scalars.
    # t_ref[i] = [pose0, sin(pose1), cos(pose1)];  T[3] == 0 -> wt_ref[3] unused.
    n_rows = o_ref.shape[0]
    for i in range(n_rows):                      # N = B*V is small & static -> unrolled
        o_ref[i, :] = (acc[i, :]
                       + t_ref[i, 0] * wt_ref[0, :]
                       + t_ref[i, 1] * wt_ref[1, :]
                       + t_ref[i, 2] * wt_ref[2, :])


def prepare_cc_projection_params(cc_w, cc_b, d_emb):
    """One-time parameter prep (do NOT call per forward): split Linear(d_emb+4 -> d_out)
    weights into the wide CLIP part (pre-cast to bf16 for the MXU weight stream) and the
    tiny 4-row T part (kept f32)."""
    w_c = jnp.asarray(cc_w[:d_emb, :], jnp.bfloat16)       # (d_emb, d_out) bf16
    w_t = jnp.asarray(cc_w[d_emb:, :], jnp.float32)        # (4, d_out) f32
    b2d = jnp.asarray(cc_b, jnp.float32).reshape(1, -1)    # (1, d_out)
    return w_c, w_t, b2d


def cc_projection(c, poses, cc_params):
    """c: (N, D_emb) CLIP embedding, poses: (N, 2) [elevation, azimuth] radians,
    cc_params from prepare_cc_projection_params.  Returns (N, D_ctx) f32."""
    w_c, w_t, b2d = cc_params
    N, _ = c.shape
    Dout = w_c.shape[1]

    # T terms.  The torch module builds T with host-side math.sin/math.cos; doing these
    # 2N-element transcendentals in XLA (not in-kernel) is both faithful and avoids any
    # scalar-sin lowering inside Mosaic.  They land in SMEM as per-row scalars.
    t3 = jnp.stack(
        [poses[:, 0], jnp.sin(poses[:, 1]), jnp.cos(poses[:, 1])], axis=-1
    ).astype(jnp.float32)                                   # (N, 3)

    # Activation cast only (weights are pre-cast once); if the CLIP encoder already
    # emits bf16 this is a no-op.
    c_bf = c.astype(jnp.bfloat16)

    return pl.pallas_call(
        _cc_projection_kernel,
        out_shape=jax.ShapeDtypeStruct((N, Dout), jnp.float32),
        in_specs=[
            pl.BlockSpec(memory_space=pltpu.MemorySpace.SMEM),   # t3 (scalars)
            pl.BlockSpec(memory_space=pltpu.MemorySpace.VMEM),   # c  (bf16)
            pl.BlockSpec(memory_space=pltpu.MemorySpace.VMEM),   # W_c (bf16)
            pl.BlockSpec(memory_space=pltpu.MemorySpace.VMEM),   # W_T (f32)
            pl.BlockSpec(memory_space=pltpu.MemorySpace.VMEM),   # b   (f32)
        ],
        out_specs=pl.BlockSpec(memory_space=pltpu.MemorySpace.VMEM),
    )(t3, c_bf, w_c, w_t, b2d)


# ---------------------------------------------------------------------------
# Kernel 2: output post-processing  255 * clamp((x + 1)/2, 0, 1)
# ---------------------------------------------------------------------------
def _postprocess_kernel(x_ref, o_ref):
    x = x_ref[...].astype(jnp.float32)           # accepts f32 or bf16 VAE output
    y = 255.0 * jnp.clip((x + 1.0) * 0.5, 0.0, 1.0)
    if jnp.issubdtype(o_ref.dtype, jnp.integer):
        # f32 -> i32 -> u8: robust lowering (fptosi + truncate), values already in [0,255].
        y = y.astype(jnp.int32).astype(o_ref.dtype)
    else:
        y = y.astype(o_ref.dtype)
    o_ref[...] = y


def _pick_slab_and_tile(total_elems, *, itemsize=4, tile_budget_bytes=2 << 20,
                        min_row_tile=32, max_lanes=16384):
    """Choose a lane-dense (rows, lanes) view of the flat elementwise problem plus a row
    tile.  lanes: largest multiple of 128 dividing total with rows a multiple of 32 and
    (preferably) >= 4 row-tiles; tile_r: multiple of 32 with tile bytes <= budget and a
    preferably-even step count >= 4 (v7x megacore)."""
    best = None
    lanes = 128
    while lanes <= min(max_lanes, total_elems):
        if total_elems % lanes == 0:
            rows = total_elems // lanes
            if rows % min_row_tile == 0:
                cand = (rows // min_row_tile >= 4, lanes)
                if best is None or cand > best[0]:
                    best = (cand, rows, lanes)
        lanes += 128
    if best is None:
        return None
    _, rows, lanes = best
    tiles = [t for t in range(min_row_tile, rows + 1, min_row_tile)
             if rows % t == 0 and t * lanes * itemsize <= tile_budget_bytes]
    if not tiles:
        tile_r = rows                                  # full-rows block (always legal)
    else:
        def score(t):
            steps = rows // t
            return (steps >= 4, steps % 2 == 0, t)
        tile_r = max(tiles, key=score)
    return rows, lanes, tile_r


def postprocess(x, *, out_dtype=jnp.uint8):
    """255 * clamp((x+1)/2, 0, 1) elementwise over x (any shape), computed on a
    lane-dense 2-D slab.  out_dtype=uint8 cuts writeback 4x (truncating cast, same as
    np.uint8 downstream); out_dtype=float32 preserves the torch module's float output."""
    total = int(x.size)
    picked = _pick_slab_and_tile(total, itemsize=x.dtype.itemsize)
    if picked is None:
        rows, lanes, tile_r = 1, total, 1              # single full-array block fallback
        x2d = x.reshape(rows, lanes)
    else:
        rows, lanes, tile_r = picked
        x2d = x.reshape(rows, lanes)                   # contiguous, layout-free reshape

    grid = (rows // tile_r,)
    out2d = pl.pallas_call(
        _postprocess_kernel,
        out_shape=jax.ShapeDtypeStruct((rows, lanes), out_dtype),
        grid=grid,
        in_specs=[pl.BlockSpec((tile_r, lanes), lambda i: (i, 0))],
        out_specs=pl.BlockSpec((tile_r, lanes), lambda i: (i, 0)),
        compiler_params=pltpu.CompilerParams(dimension_semantics=("parallel",)),
    )(x2d)
    return out2d.reshape(x.shape)


# ---------------------------------------------------------------------------
# Forward glue (mirrors Diffusion.forward -> render over batch x n_views)
# ---------------------------------------------------------------------------
def diffusion_forward(c_emb, poses, cc_params, decoded_samples, B, V, H, W,
                      *, image_dtype=jnp.uint8):
    N = B * V

    c = c_emb[:, 0, :]                                        # (N, D_emb), 1 token
    c_proj = cc_projection(c, poses.reshape(N, 2), cc_params)  # (N, D_ctx)

    # TODO(synk): DDIMSampler.sample (UNet eps-model) and VAE encode/decode_first_stage
    # are external sub-models; `decoded_samples` stands in for x_samples_ddim.

    out = postprocess(decoded_samples, out_dtype=image_dtype)  # (N, 3, H, W)
    # 'c h w -> h w c' on the (uint8) result: 4x fewer bytes than transposing f32.
    out = jnp.transpose(out, (0, 2, 3, 1))                     # (N, H, W, 3)
    out_images = out.reshape(B, V, H, W, 3)                    # torch.stack over batch

    # TODO(synk): train_transforms(np.asarray(outs)) is an external callable; skipped.
    return c_proj, out_images


if __name__ == "__main__":
    key = jax.random.PRNGKey(0)
    B, V = 2, 4              # batch_size, n_views
    H = W = 32               # module hardcodes 256; small spatial for the test
    D_EMB, D_CTX = 128, 128  # stand-ins for CLIP 768 / cc_projection 772 -> 768
    N = B * V

    k1, k2, k3, k4, k5 = jax.random.split(key, 5)

    # TODO(synk): model.get_learned_conditioning (CLIP image encoder) not translated;
    # deterministic random embeddings stand in for its (N, 1, D_emb) output.
    c_emb = jax.random.normal(k1, (N, 1, D_EMB), jnp.float32)

    # poses[..., 0]=elevation (radians), poses[..., 1]=azimuth (radians)
    poses = jax.random.uniform(k2, (B, V, 2), jnp.float32, 0.0, 2.0 * math.pi)

    # cc_projection parameters: Linear(D_EMB+4 -> D_CTX)
    cc_w = jax.random.normal(k3, (D_EMB + 4, D_CTX), jnp.float32) / math.sqrt(D_EMB + 4)
    cc_b = 0.01 * jax.random.normal(k5, (D_CTX,), jnp.float32)

    # Stand-in for decode_first_stage(samples_ddim): (N, 3, H, W) roughly in [-1, 1]
    decoded = 1.2 * jax.random.normal(k4, (N, 3, H, W), jnp.float32)

    # One-time parameter prep (split + bf16 cast happens here, NOT per call).
    cc_params = prepare_cc_projection_params(cc_w, cc_b, D_EMB)

    c_proj, out_u8 = diffusion_forward(
        c_emb, poses, cc_params, decoded, B, V, H, W, image_dtype=jnp.uint8
    )
    _, out_f32 = diffusion_forward(
        c_emb, poses, cc_params, decoded, B, V, H, W, image_dtype=jnp.float32
    )
    jax.block_until_ready((c_proj, out_u8, out_f32))

    # ---------------- Reference checks (plain JAX) ----------------
    p = poses.reshape(N, 2)
    T = jnp.stack(
        [p[:, 0], jnp.sin(p[:, 1]), jnp.cos(p[:, 1]), jnp.zeros((N,), jnp.float32)],
        axis=-1,
    )
    c_flat = c_emb[:, 0, :]
    c_T = jnp.concatenate([c_flat, T], axis=-1)

    # Full-f32 module semantics (loose tolerance: kernel uses bf16 inputs on the wide
    # contraction with f32 accumulation).
    ref_f32 = jnp.dot(c_T, cc_w, precision=lax.Precision.HIGHEST) + cc_b
    assert jnp.allclose(c_proj, ref_f32, atol=5e-2, rtol=5e-2), (
        "cc_projection drift vs f32 reference"
    )

    # Matched-precision reference (bf16-rounded inputs, f32 accumulation): tight.
    c_bfr = c_flat.astype(jnp.bfloat16).astype(jnp.float32)
    wc_bfr = cc_w[:D_EMB].astype(jnp.bfloat16).astype(jnp.float32)
    ref_bf = (
        jnp.dot(c_bfr, wc_bfr, precision=lax.Precision.HIGHEST)
        + jnp.dot(T, cc_w[D_EMB:], precision=lax.Precision.HIGHEST)
        + cc_b
    )
    assert jnp.allclose(c_proj, ref_bf, atol=2e-3, rtol=2e-3), (
        "cc_projection mismatch (matched precision)"
    )

    # Postprocess: float path is bit-exact with the module's 255*clamp((x+1)/2,0,1).
    ref_img_f32 = 255.0 * jnp.clip((decoded + 1.0) / 2.0, 0.0, 1.0)
    ref_img_f32 = jnp.transpose(ref_img_f32, (0, 2, 3, 1)).reshape(B, V, H, W, 3)
    assert jnp.allclose(out_f32, ref_img_f32, atol=1e-4), "postprocess (f32) mismatch"

    # uint8 path: allow off-by-one in case float->int rounding modes differ.
    ref_img_u8 = ref_img_f32.astype(jnp.uint8)
    diff = jnp.abs(out_u8.astype(jnp.int32) - ref_img_u8.astype(jnp.int32))
    assert int(jnp.max(diff)) <= 1, "postprocess (uint8) mismatch"

    print("KERNEL_OK")
</pallas_src>

<mosaic_0001>
module attributes {stable_mosaic.version = 11 : i64} {
  func.func @_cc_projection_kernel(%arg0: memref<8x3xf32, #tpu.memory_space<smem>>, %arg1: memref<8x128xbf16, #tpu.memory_space<vmem>>, %arg2: memref<128x128xbf16, #tpu.memory_space<vmem>>, %arg3: memref<4x128xf32, #tpu.memory_space<vmem>>, %arg4: memref<1x128xf32, #tpu.memory_space<vmem>>, %arg5: memref<8x128xf32, #tpu.memory_space<vmem>>) attributes {dimension_semantics = [], scalar_prefetch = 0 : i64, scratch_operands = 0 : i64, tpu.core_type = #tpu.core_type<tc>} {
    %c0 = arith.constant 0 : index
    %c0_0 = arith.constant 0 : index
    %0 = vector.load %arg1[%c0, %c0_0] : memref<8x128xbf16, #tpu.memory_space<vmem>>, vector<8x128xbf16>
    %c0_1 = arith.constant 0 : index
    %c0_2 = arith.constant 0 : index
    %1 = vector.load %arg2[%c0_1, %c0_2] : memref<128x128xbf16, #tpu.memory_space<vmem>>, vector<128x128xbf16>
    %cst = arith.constant dense<0.000000e+00> : vector<8x128xf32>
    %2 = tpu.matmul %0, %1, %cst {dimension_numbers = #tpu.dot_dimension_numbers<[1], [0], [0], [1], [0, 0, 1, 1], [], []>} : vector<8x128xbf16>, vector<128x128xbf16>, vector<8x128xf32> -> vector<8x128xf32>
    %c0_3 = arith.constant 0 : index
    %c0_4 = arith.constant 0 : index
    %3 = vector.load %arg4[%c0_3, %c0_4] : memref<1x128xf32, #tpu.memory_space<vmem>>, vector<1x128xf32>
    %4 = vector.broadcast %3 : vector<1x128xf32> to vector<8x128xf32>
    %5 = arith.addf %2, %4 : vector<8x128xf32>
    %6 = vector.extract_strided_slice %5 {offsets = [0, 0], sizes = [1, 128], strides = [1, 1]} : vector<8x128xf32> to vector<1x128xf32>
    %7 = vector.shape_cast %6 : vector<1x128xf32> to vector<128xf32>
    %c0_5 = arith.constant 0 : index
    %c0_6 = arith.constant 0 : index
    %8 = memref.load %arg0[%c0_5, %c0_6] : memref<8x3xf32, #tpu.memory_space<smem>>
    %c0_7 = arith.constant 0 : index
    %c0_8 = arith.constant 0 : index
    %9 = vector.load %arg3[%c0_7, %c0_8] : memref<4x128xf32, #tpu.memory_space<vmem>>, vector<1x128xf32>
    %10 = vector.shape_cast %9 : vector<1x128xf32> to vector<128xf32>
    %11 = vector.broadcast %8 : f32 to vector<128xf32>
    %12 = arith.mulf %11, %10 : vector<128xf32>
    %13 = arith.addf %7, %12 : vector<128xf32>
    %c0_9 = arith.constant 0 : index
    %c1 = arith.constant 1 : index
    %14 = memref.load %arg0[%c0_9, %c1] : memref<8x3xf32, #tpu.memory_space<smem>>
    %c1_10 = arith.constant 1 : index
    %c0_11 = arith.constant 0 : index
    %15 = vector.load %arg3[%c1_10, %c0_11] : memref<4x128xf32, #tpu.memory_space<vmem>>, vector<1x128xf32>
    %16 = vector.shape_cast %15 : vector<1x128xf32> to vector<128xf32>
    %17 = vector.broadcast %14 : f32 to vector<128xf32>
    %18 = arith.mulf %17, %16 : vector<128xf32>
    %19 = arith.addf %13, %18 : vector<128xf32>
    %c0_12 = arith.constant 0 : index
    %c2 = arith.constant 2 : index
    %20 = memref.load %arg0[%c0_12, %c2] : memref<8x3xf32, #tpu.memory_space<smem>>
    %c2_13 = arith.constant 2 : index
    %c0_14 = arith.constant 0 : index
    %21 = vector.load %arg3[%c2_13, %c0_14] : memref<4x128xf32, #tpu.memory_space<vmem>>, vector<1x128xf32>
    %22 = vector.shape_cast %21 : vector<1x128xf32> to vector<128xf32>
    %23 = vector.broadcast %20 : f32 to vector<128xf32>
    %24 = arith.mulf %23, %22 : vector<128xf32>
    %25 = arith.addf %19, %24 : vector<128xf32>
    %c0_15 = arith.constant 0 : index
    %c0_16 = arith.constant 0 : index
    %26 = vector.load %arg5[%c0_15, %c0_16] : memref<8x128xf32, #tpu.memory_space<vmem>>, vector<1x128xf32>
    %27 = vector.shape_cast %26 : vector<1x128xf32> to vector<128xf32>
    %28 = vector.shape_cast %25 : vector<128xf32> to vector<1x128xf32>
    tpu.vector_store %arg5[%c0_15, %c0_16], %28 {strides = array<i32>} : memref<8x128xf32, #tpu.memory_space<vmem>>, vector<1x128xf32>,
    %29 = vector.extract_strided_slice %5 {offsets = [1, 0], sizes = [1, 128], strides = [1, 1]} : vector<8x128xf32> to vector<1x128xf32>
    %30 = vector.shape_cast %29 : vector<1x128xf32> to vector<128xf32>
    %c1_17 = arith.constant 1 : index
    %c0_18 = arith.constant 0 : index
    %31 = memref.load %arg0[%c1_17, %c0_18] : memref<8x3xf32, #tpu.memory_space<smem>>
    %c0_19 = arith.constant 0 : index
    %c0_20 = arith.constant 0 : index
    %32 = vector.load %arg3[%c0_19, %c0_20] : memref<4x128xf32, #tpu.memory_space<vmem>>, vector<1x128xf32>
    %33 = vector.shape_cast %32 : vector<1x128xf32> to vector<128xf32>
    %34 = vector.broadcast %31 : f32 to vector<128xf32>
    %35 = arith.mulf %34, %33 : vector<128xf32>
    %36 = arith.addf %30, %35 : vector<128xf32>
    %c1_21 = arith.constant 1 : index
    %c1_22 = arith.constant 1 : index
    %37 = memref.load %arg0[%c1_21, %c1_22] : memref<8x3xf32, #tpu.memory_space<smem>>
    %c1_23 = arith.constant 1 : index
    %c0_24 = arith.constant 0 : index
    %38 = vector.load %arg3[%c1_23, %c0_24] : memref<4x128xf32, #tpu.memory_space<vmem>>, vector<1x128xf32>
    %39 = vector.shape_cast %38 : vector<1x128xf32> to vector<128xf32>
    %40 = vector.broadcast %37 : f32 to vector<128xf32>
    %41 = arith.mulf %40, %39 : vector<128xf32>
    %42 = arith.addf %36, %41 : vector<128xf32>
    %c1_25 = arith.constant 1 : index
    %c2_26 = arith.constant 2 : index
    %43 = memref.load %arg0[%c1_25, %c2_26] : memref<8x3xf32, #tpu.memory_space<smem>>
    %c2_27 = arith.constant 2 : index
    %c0_28 = arith.constant 0 : index
    %44 = vector.load %arg3[%c2_27, %c0_28] : memref<4x128xf32, #tpu.memory_space<vmem>>, vector<1x128xf32>
    %45 = vector.shape_cast %44 : vector<1x128xf32> to vector<128xf32>
    %46 = vector.broadcast %43 : f32 to vector<128xf32>
    %47 = arith.mulf %46, %45 : vector<128xf32>
    %48 = arith.addf %42, %47 : vector<128xf32>
    %c1_29 = arith.constant 1 : index
    %c0_30 = arith.constant 0 : index
    %49 = vector.load %arg5[%c1_29, %c0_30] : memref<8x128xf32, #tpu.memory_space<vmem>>, vector<1x128xf32>
    %50 = vector.shape_cast %49 : vector<1x128xf32> to vector<128xf32>
    %51 = vector.shape_cast %48 : vector<128xf32> to vector<1x128xf32>
    tpu.vector_store %arg5[%c1_29, %c0_30], %51 {strides = array<i32>} : memref<8x128xf32, #tpu.memory_space<vmem>>, vector<1x128xf32>,
    %52 = vector.extract_strided_slice %5 {offsets = [2, 0], sizes = [1, 128], strides = [1, 1]} : vector<8x128xf32> to vector<1x128xf32>
    %53 = vector.shape_cast %52 : vector<1x128xf32> to vector<128xf32>
    %c2_31 = arith.constant 2 : index
    %c0_32 = arith.constant 0 : index
    %54 = memref.load %arg0[%c2_31, %c0_32] : memref<8x3xf32, #tpu.memory_space<smem>>
    %c0_33 = arith.constant 0 : index
    %c0_34 = arith.constant 0 : index
    %55 = vector.load %arg3[%c0_33, %c0_34] : memref<4x128xf32, #tpu.memory_space<vmem>>, vector<1x128xf32>
    %56 = vector.shape_cast %55 : vector<1x128xf32> to vector<128xf32>
    %57 = vector.broadcast %54 : f32 to vector<128xf32>
    %58 = arith.mulf %57, %56 : vector<128xf32>
    %59 = arith.addf %53, %58 : vector<128xf32>
    %c2_35 = arith.constant 2 : index
    %c1_36 = arith.constant 1 : index
    %60 = memref.load %arg0[%c2_35, %c1_36] : memref<8x3xf32, #tpu.memory_space<smem>>
    %c1_37 = arith.constant 1 : index
    %c0_38 = arith.constant 0 : index
    %61 = vector.load %arg3[%c1_37, %c0_38] : memref<4x128xf32, #tpu.memory_space<vmem>>, vector<1x128xf32>
    %62 = vector.shape_cast %61 : vector<1x128xf32> to vector<128xf32>
    %63 = vector.broadcast %60 : f32 to vector<128xf32>
    %64 = arith.mulf %63, %62 : vector<128xf32>
    %65 = arith.addf %59, %64 : vector<128xf32>
    %c2_39 = arith.constant 2 : index
    %c2_40 = arith.constant 2 : index
    %66 = memref.load %arg0[%c2_39, %c2_40] : memref<8x3xf32, #tpu.memory_space<smem>>
    %c2_41 = arith.constant 2 : index
    %c0_42 = arith.constant 0 : index
    %67 = vector.load %arg3[%c2_41, %c0_42] : memref<4x128xf32, #tpu.memory_space<vmem>>, vector<1x128xf32>
    %68 = vector.shape_cast %67 : vector<1x128xf32> to vector<128xf32>
    %69 = vector.broadcast %66 : f32 to vector<128xf32>
    %70 = arith.mulf %69, %68 : vector<128xf32>
    %71 = arith.addf %65, %70 : vector<128xf32>
    %c2_43 = arith.constant 2 : index
    %c0_44 = arith.constant 0 : index
    %72 = vector.load %arg5[%c2_43, %c0_44] : memref<8x128xf32, #tpu.memory_space<vmem>>, vector<1x128xf32>
    %73 = vector.shape_cast %72 : vector<1x128xf32> to vector<128xf32>
    %74 = vector.shape_cast %71 : vector<128xf32> to vector<1x128xf32>
    tpu.vector_store %arg5[%c2_43, %c0_44], %74 {strides = array<i32>} : memref<8x128xf32, #tpu.memory_space<vmem>>, vector<1x128xf32>,
    %75 = vector.extract_strided_slice %5 {offsets = [3, 0], sizes = [1, 128], strides = [1, 1]} : vector<8x128xf32> to vector<1x128xf32>
    %76 = vector.shape_cast %75 : vector<1x128xf32> to vector<128xf32>
    %c3 = arith.constant 3 : index
    %c0_45 = arith.constant 0 : index
    %77 = memref.load %arg0[%c3, %c0_45] : memref<8x3xf32, #tpu.memory_space<smem>>
    %c0_46 = arith.constant 0 : index
    %c0_47 = arith.constant 0 : index
    %78 = vector.load %arg3[%c0_46, %c0_47] : memref<4x128xf32, #tpu.memory_space<vmem>>, vector<1x128xf32>
    %79 = vector.shape_cast %78 : vector<1x128xf32> to vector<128xf32>
    %80 = vector.broadcast %77 : f32 to vector<128xf32>
    %81 = arith.mulf %80, %79 : vector<128xf32>
    %82 = arith.addf %76, %81 : vector<128xf32>
    %c3_48 = arith.constant 3 : index
    %c1_49 = arith.constant 1 : index
    %83 = memref.load %arg0[%c3_48, %c1_49] : memref<8x3xf32, #tpu.memory_space<smem>>
    %c1_50 = arith.constant 1 : index
    %c0_51 = arith.constant 0 : index
    %84 = vector.load %arg3[%c1_50, %c0_51] : memref<4x128xf32, #tpu.memory_space<vmem>>, vector<1x128xf32>
    %85 = vector.shape_cast %84 : vector<1x128xf32> to vector<128xf32>
    %86 = vector.broadcast %83 : f32 to vector<128xf32>
    %87 = arith.mulf %86, %85 : vector<128xf32>
    %88 = arith.addf %82, %87 : vector<128xf32>
    %c3_52 = arith.constant 3 : index
    %c2_53 = arith.constant 2 : index
    %89 = memref.load %arg0[%c3_52, %c2_53] : memref<8x3xf32, #tpu.memory_space<smem>>
    %c2_54 = arith.constant 2 : index
    %c0_55 = arith.constant 0 : index
    %90 = vector.load %arg3[%c2_54, %c0_55] : memref<4x128xf32, #tpu.memory_space<vmem>>, vector<1x128xf32>
    %91 = vector.shape_cast %90 : vector<1x128xf32> to vector<128xf32>
    %92 = vector.broadcast %89 : f32 to vector<128xf32>
    %93 = arith.mulf %92, %91 : vector<128xf32>
    %94 = arith.addf %88, %93 : vector<128xf32>
    %c3_56 = arith.constant 3 : index
    %c0_57 = arith.constant 0 : index
    %95 = vector.load %arg5[%c3_56, %c0_57] : memref<8x128xf32, #tpu.memory_space<vmem>>, vector<1x128xf32>
    %96 = vector.shape_cast %95 : vector<1x128xf32> to vector<128xf32>
    %97 = vector.shape_cast %94 : vector<128xf32> to vector<1x128xf32>
    tpu.vector_store %arg5[%c3_56, %c0_57], %97 {strides = array<i32>} : memref<8x128xf32, #tpu.memory_space<vmem>>, vector<1x128xf32>,
    %98 = vector.extract_strided_slice %5 {offsets = [4, 0], sizes = [1, 128], strides = [1, 1]} : vector<8x128xf32> to vector<1x128xf32>
    %99 = vector.shape_cast %98 : vector<1x128xf32> to vector<128xf32>
    %c4 = arith.constant 4 : index
    %c0_58 = arith.constant 0 : index
    %100 = memref.load %arg0[%c4, %c0_58] : memref<8x3xf32, #tpu.memory_space<smem>>
    %c0_59 = arith.constant 0 : index
    %c0_60 = arith.constant 0 : index
    %101 = vector.load %arg3[%c0_59, %c0_60] : memref<4x128xf32, #tpu.memory_space<vmem>>, vector<1x128xf32>
    %102 = vector.shape_cast %101 : vector<1x128xf32> to vector<128xf32>
    %103 = vector.broadcast %100 : f32 to vector<128xf32>
    %104 = arith.mulf %103, %102 : vector<128xf32>
    %105 = arith.addf %99, %104 : vector<128xf32>
    %c4_61 = arith.constant 4 : index
    %c1_62 = arith.constant 1 : index
    %106 = memref.load %arg0[%c4_61, %c1_62] : memref<8x3xf32, #tpu.memory_space<smem>>
    %c1_63 = arith.constant 1 : index
    %c0_64 = arith.constant 0 : index
    %107 = vector.load %arg3[%c1_63, %c0_64] : memref<4x128xf32, #tpu.memory_space<vmem>>, vector<1x128xf32>
    %108 = vector.shape_cast %107 : vector<1x128xf32> to vector<128xf32>
    %109 = vector.broadcast %106 : f32 to vector<128xf32>
    %110 = arith.mulf %109, %108 : vector<128xf32>
    %111 = arith.addf %105, %110 : vector<128xf32>
    %c4_65 = arith.constant 4 : index
    %c2_66 = arith.constant 2 : index
    %112 = memref.load %arg0[%c4_65, %c2_66] : memref<8x3xf32, #tpu.memory_space<smem>>
    %c2_67 = arith.constant 2 : index
    %c0_68 = arith.constant 0 : index
    %113 = vector.load %arg3[%c2_67, %c0_68] : memref<4x128xf32, #tpu.memory_space<vmem>>, vector<1x128xf32>
    %114 = vector.shape_cast %113 : vector<1x128xf32> to vector<128xf32>
    %115 = vector.broadcast %112 : f32 to vector<128xf32>
    %116 = arith.mulf %115, %114 : vector<128xf32>
    %117 = arith.addf %111, %116 : vector<128xf32>
    %c4_69 = arith.constant 4 : index
    %c0_70 = arith.constant 0 : index
    %118 = vector.load %arg5[%c4_69, %c0_70] : memref<8x128xf32, #tpu.memory_space<vmem>>, vector<1x128xf32>
    %119 = vector.shape_cast %118 : vector<1x128xf32> to vector<128xf32>
    %120 = vector.shape_cast %117 : vector<128xf32> to vector<1x128xf32>
    tpu.vector_store %arg5[%c4_69, %c0_70], %120 {strides = array<i32>} : memref<8x128xf32, #tpu.memory_space<vmem>>, vector<1x128xf32>,
    %121 = vector.extract_strided_slice %5 {offsets = [5, 0], sizes = [1, 128], strides = [1, 1]} : vector<8x128xf32> to vector<1x128xf32>
    %122 = vector.shape_cast %121 : vector<1x128xf32> to vector<128xf32>
    %c5 = arith.constant 5 : index
    %c0_71 = arith.constant 0 : index
    %123 = memref.load %arg0[%c5, %c0_71] : memref<8x3xf32, #tpu.memory_space<smem>>
    %c0_72 = arith.constant 0 : index
    %c0_73 = arith.constant 0 : index
    %124 = vector.load %arg3[%c0_72, %c0_73] : memref<4x128xf32, #tpu.memory_space<vmem>>, vector<1x128xf32>
    %125 = vector.shape_cast %124 : vector<1x128xf32> to vector<128xf32>
    %126 = vector.broadcast %123 : f32 to vector<128xf32>
    %127 = arith.mulf %126, %125 : vector<128xf32>
    %128 = arith.addf %122, %127 : vector<128xf32>
    %c5_74 = arith.constant 5 : index
    %c1_75 = arith.constant 1 : index
    %129 = memref.load %arg0[%c5_74, %c1_75] : memref<8x3xf32, #tpu.memory_space<smem>>
    %c1_76 = arith.constant 1 : index
    %c0_77 = arith.constant 0 : index
    %130 = vector.load %arg3[%c1_76, %c0_77] : memref<4x128xf32, #tpu.memory_space<vmem>>, vector<1x128xf32>
    %131 = vector.shape_cast %130 : vector<1x128xf32> to vector<128xf32>
    %132 = vector.broadcast %129 : f32 to vector<128xf32>
    %133 = arith.mulf %132, %131 : vector<128xf32>
    %134 = arith.addf %128, %133 : vector<128xf32>
    %c5_78 = arith.constant 5 : index
    %c2_79 = arith.constant 2 : index
    %135 = memref.load %arg0[%c5_78, %c2_79] : memref<8x3xf32, #tpu.memory_space<smem>>
    %c2_80 = arith.constant 2 : index
    %c0_81 = arith.constant 0 : index
    %136 = vector.load %arg3[%c2_80, %c0_81] : memref<4x128xf32, #tpu.memory_space<vmem>>, vector<1x128xf32>
    %137 = vector.shape_cast %136 : vector<1x128xf32> to vector<128xf32>
    %138 = vector.broadcast %135 : f32 to vector<128xf32>
    %139 = arith.mulf %138, %137 : vector<128xf32>
    %140 = arith.addf %134, %139 : vector<128xf32>
    %c5_82 = arith.constant 5 : index
    %c0_83 = arith.constant 0 : index
    %141 = vector.load %arg5[%c5_82, %c0_83] : memref<8x128xf32, #tpu.memory_space<vmem>>, vector<1x128xf32>
    %142 = vector.shape_cast %141 : vector<1x128xf32> to vector<128xf32>
    %143 = vector.shape_cast %140 : vector<128xf32> to vector<1x128xf32>
    tpu.vector_store %arg5[%c5_82, %c0_83], %143 {strides = array<i32>} : memref<8x128xf32, #tpu.memory_space<vmem>>, vector<1x128xf32>,
    %144 = vector.extract_strided_slice %5 {offsets = [6, 0], sizes = [1, 128], strides = [1, 1]} : vector<8x128xf32> to vector<1x128xf32>
    %145 = vector.shape_cast %144 : vector<1x128xf32> to vector<128xf32>
    %c6 = arith.constant 6 : index
    %c0_84 = arith.constant 0 : index
    %146 = memref.load %arg0[%c6, %c0_84] : memref<8x3xf32, #tpu.memory_space<smem>>
    %c0_85 = arith.constant 0 : index
    %c0_86 = arith.constant 0 : index
    %147 = vector.load %arg3[%c0_85, %c0_86] : memref<4x128xf32, #tpu.memory_space<vmem>>, vector<1x128xf32>
    %148 = vector.shape_cast %147 : vector<1x128xf32> to vector<128xf32>
    %149 = vector.broadcast %146 : f32 to vector<128xf32>
    %150 = arith.mulf %149, %148 : vector<128xf32>
    %151 = arith.addf %145, %150 : vector<128xf32>
    %c6_87 = arith.constant 6 : index
    %c1_88 = arith.constant 1 : index
    %152 = memref.load %arg0[%c6_87, %c1_88] : memref<8x3xf32, #tpu.memory_space<smem>>
    %c1_89 = arith.constant 1 : index
    %c0_90 = arith.constant 0 : index
    %153 = vector.load %arg3[%c1_89, %c0_90] : memref<4x128xf32, #tpu.memory_space<vmem>>, vector<1x128xf32>
    %154 = vector.shape_cast %153 : vector<1x128xf32> to vector<128xf32>
    %155 = vector.broadcast %152 : f32 to vector<128xf32>
    %156 = arith.mulf %155, %154 : vector<128xf32>
    %157 = arith.addf %151, %156 : vector<128xf32>
    %c6_91 = arith.constant 6 : index
    %c2_92 = arith.constant 2 : index
    %158 = memref.load %arg0[%c6_91, %c2_92] : memref<8x3xf32, #tpu.memory_space<smem>>
    %c2_93 = arith.constant 2 : index
    %c0_94 = arith.constant 0 : index
    %159 = vector.load %arg3[%c2_93, %c0_94] : memref<4x128xf32, #tpu.memory_space<vmem>>, vector<1x128xf32>
    %160 = vector.shape_cast %159 : vector<1x128xf32> to vector<128xf32>
    %161 = vector.broadcast %158 : f32 to vector<128xf32>
    %162 = arith.mulf %161, %160 : vector<128xf32>
    %163 = arith.addf %157, %162 : vector<128xf32>
    %c6_95 = arith.constant 6 : index
    %c0_96 = arith.constant 0 : index
    %164 = vector.load %arg5[%c6_95, %c0_96] : memref<8x128xf32, #tpu.memory_space<vmem>>, vector<1x128xf32>
    %165 = vector.shape_cast %164 : vector<1x128xf32> to vector<128xf32>
    %166 = vector.shape_cast %163 : vector<128xf32> to vector<1x128xf32>
    tpu.vector_store %arg5[%c6_95, %c0_96], %166 {strides = array<i32>} : memref<8x128xf32, #tpu.memory_space<vmem>>, vector<1x128xf32>,
    %167 = vector.extract_strided_slice %5 {offsets = [7, 0], sizes = [1, 128], strides = [1, 1]} : vector<8x128xf32> to vector<1x128xf32>
    %168 = vector.shape_cast %167 : vector<1x128xf32> to vector<128xf32>
    %c7 = arith.constant 7 : index
    %c0_97 = arith.constant 0 : index
    %169 = memref.load %arg0[%c7, %c0_97] : memref<8x3xf32, #tpu.memory_space<smem>>
    %c0_98 = arith.constant 0 : index
    %c0_99 = arith.constant 0 : index
    %170 = vector.load %arg3[%c0_98, %c0_99] : memref<4x128xf32, #tpu.memory_space<vmem>>, vector<1x128xf32>
    %171 = vector.shape_cast %170 : vector<1x128xf32> to vector<128xf32>
    %172 = vector.broadcast %169 : f32 to vector<128xf32>
    %173 = arith.mulf %172, %171 : vector<128xf32>
    %174 = arith.addf %168, %173 : vector<128xf32>
    %c7_100 = arith.constant 7 : index
    %c1_101 = arith.constant 1 : index
    %175 = memref.load %arg0[%c7_100, %c1_101] : memref<8x3xf32, #tpu.memory_space<smem>>
    %c1_102 = arith.constant 1 : index
    %c0_103 = arith.constant 0 : index
    %176 = vector.load %arg3[%c1_102, %c0_103] : memref<4x128xf32, #tpu.memory_space<vmem>>, vector<1x128xf32>
    %177 = vector.shape_cast %176 : vector<1x128xf32> to vector<128xf32>
    %178 = vector.broadcast %175 : f32 to vector<128xf32>
    %179 = arith.mulf %178, %177 : vector<128xf32>
    %180 = arith.addf %174, %179 : vector<128xf32>
    %c7_104 = arith.constant 7 : index
    %c2_105 = arith.constant 2 : index
    %181 = memref.load %arg0[%c7_104, %c2_105] : memref<8x3xf32, #tpu.memory_space<smem>>
    %c2_106 = arith.constant 2 : index
    %c0_107 = arith.constant 0 : index
    %182 = vector.load %arg3[%c2_106, %c0_107] : memref<4x128xf32, #tpu.memory_space<vmem>>, vector<1x128xf32>
    %183 = vector.shape_cast %182 : vector<1x128xf32> to vector<128xf32>
    %184 = vector.broadcast %181 : f32 to vector<128xf32>
    %185 = arith.mulf %184, %183 : vector<128xf32>
    %186 = arith.addf %180, %185 : vector<128xf32>
    %c7_108 = arith.constant 7 : index
    %c0_109 = arith.constant 0 : index
    %187 = vector.load %arg5[%c7_108, %c0_109] : memref<8x128xf32, #tpu.memory_space<vmem>>, vector<1x128xf32>
    %188 = vector.shape_cast %187 : vector<1x128xf32> to vector<128xf32>
    %189 = vector.shape_cast %186 : vector<128xf32> to vector<1x128xf32>
    tpu.vector_store %arg5[%c7_108, %c0_109], %189 {strides = array<i32>} : memref<8x128xf32, #tpu.memory_space<vmem>>, vector<1x128xf32>,
    return
  }
}

</mosaic_0001>

<llo_original>
// kernel: tpu_custom_call.1
$region0: #{tpu_custom_call.1}
  #allocation0 [shape = 'u32[]', space=smem, size = 0x4, offset = 0x4, fixed_abs, tag = 'smem constant byte address 0x4 - core index']
  #allocation1 [shape = 'u32[144,128]{1,0:T(1,128)}', space=vmem, size = 0x12000, scoped, tag = 'internal scratch']
  %s0 = inlined_call_operand.vmem [shape: f32[8,3], index: 0, kind: input, shape index: {}]
  %s1 = inlined_call_operand.vmem [shape: bf16[8,128], index: 1, kind: input, shape index: {}]
  %s2 = inlined_call_operand.hbm [shape: bf16[128,128], index: 2, kind: input, shape index: {}]
  %s3 = inlined_call_operand.vmem [shape: f32[4,128], index: 3, kind: input, shape index: {}]
  %s4 = inlined_call_operand.vmem [shape: f32[1,128], index: 4, kind: input, shape index: {}]
  %s5 = inlined_call_operand.hbm [shape: f32[8,128], index: 5, kind: output, shape index: {}]
  %s6 = sld [smem:[#allocation0]]
  $region38: #{tpu_custom_call.1} parent=0
    _
  %s8 = ssub.s32 1, %s6
  %s9 = scalar_select 0, %s8, %s6
  $region1: #{tpu_custom_call.1} parent=0
    #allocation2 [shape = 'u8[4096]{0}', space=smem, size = 0x1000, scoped, tag = 'input window, operand 0, single buffered']
    #allocation3 [shape = 's32[1]{0}', space=sflag, size = 0x4, scoped, tag = 'scoped memory for tpu_custom_call.1']
    #allocation4 [shape = 's32[1]{0}', space=sflag, size = 0x4, scoped, tag = 'scoped memory for tpu_custom_call.1']
    #allocation5 [shape = 's32[1]{0}', space=sflag, size = 0x4, scoped, tag = 'scoped memory for tpu_custom_call.1']
    #allocation6 [shape = 'u8[32768]{0}', space=vmem, size = 0x8000, scoped, tag = 'input window, operand 2, single buffered']
    #allocation7 [shape = 'u8[4096]{0}', space=vmem, size = 0x1000, scoped, tag = 'output window, operand 0, single buffered']
    %10 = vsyncpa [#allocation5], 0
    %11 = vsyncpa [#allocation3], 0
    %12 = vsyncpa [#allocation4], 0
    // Predicated region
    $region2: #{tpu_custom_call.1} parent=1 // pred_check
      _
    $region3: #{tpu_custom_call.1} parent=1 // pred_check_branch
      %14 = sbr.rel (0) target = $region5
    $region4: #{tpu_custom_call.1} parent=1 // pred_region
      %s16 = ssub.s32 128, 128
      %17 = vsyncadd [#allocation5], %s16
      %s19 = sshll.u32 %s0, 4
      %s20 = int_to_ptr.vmem [resolvable:$true] %s19
      %22 = dma.vmem_to_smem %s20, 128, [#allocation2], [#allocation5]
    $region5: #{tpu_custom_call.1} parent=1 // pred_fallthru
      _
    // Predicated region
    $region6: #{tpu_custom_call.1} parent=1 // pred_check
      _
    $region7: #{tpu_custom_call.1} parent=1 // pred_check_branch
      %24 = sbr.rel (0) target = $region9
    $region8: #{tpu_custom_call.1} parent=1 // pred_region
      _
    $region9: #{tpu_custom_call.1} parent=1 // pred_fallthru
      _
    // Predicated region
    $region10: #{tpu_custom_call.1} parent=1 // pred_check
      _
    $region11: #{tpu_custom_call.1} parent=1 // pred_check_branch
      %26 = sbr.rel (0) target = $region13
    $region12: #{tpu_custom_call.1} parent=1 // pred_region
      %s28 = ssub.s32 1024, 1024
      %29 = vsyncadd [#allocation3], %s28
      %s30 = sshll.u32 [#allocation6], 4
      %s31 = int_to_ptr.vmem [resolvable:$true] %s30
      %36 = dma.hbm_to_vmem [thread:$0]  %s2, 1024, %s31, [#allocation3], 64, 64, 4
    $region13: #{tpu_custom_call.1} parent=1 // pred_fallthru
      _
    // Predicated region
    $region14: #{tpu_custom_call.1} parent=1 // pred_check
      _
    $region15: #{tpu_custom_call.1} parent=1 // pred_check_branch
      %38 = sbr.rel (0) target = $region17
    $region16: #{tpu_custom_call.1} parent=1 // pred_region
      _
    $region17: #{tpu_custom_call.1} parent=1 // pred_fallthru
      _
    // Predicated region
    $region18: #{tpu_custom_call.1} parent=1 // pred_check
      _
    $region19: #{tpu_custom_call.1} parent=1 // pred_check_branch
      %40 = sbr.rel (0) target = $region21
    $region20: #{tpu_custom_call.1} parent=1 // pred_region
      _
    $region21: #{tpu_custom_call.1} parent=1 // pred_fallthru
      _
    // Predicated region
    $region22: #{tpu_custom_call.1} parent=1 // pred_check
      _
    $region23: #{tpu_custom_call.1} parent=1 // pred_check_branch
      %42 = sbr.rel (0) target = $region25
    $region24: #{tpu_custom_call.1} parent=1 // pred_region
      %43 = dma.done [#allocation5], 128
    $region25: #{tpu_custom_call.1} parent=1 // pred_fallthru
      _
    // Predicated region
    $region26: #{tpu_custom_call.1} parent=1 // pred_check
      _
    $region27: #{tpu_custom_call.1} parent=1 // pred_check_branch
      %45 = sbr.rel (0) target = $region29
    $region28: #{tpu_custom_call.1} parent=1 // pred_region
      %46 = dma.done [#allocation3], 1024
    $region29: #{tpu_custom_call.1} parent=1 // pred_fallthru
      _
    %47 = sfence
    %v49 = vld [vmem:[%s1] sm:$0xf]
    %v50 = vld [vmem:[#allocation6] sm:$0xf]
    %v51 = vld [vmem:[#allocation6 + $0x4] sm:$0xf]
    %v52 = vld [vmem:[#allocation6 + $0x8] sm:$0xf]
    %v53 = vld [vmem:[#allocation6 + $0xc] sm:$0xf]
    %v54 = vld [vmem:[#allocation6 + $0x10] sm:$0xf]
    %v55 = vld [vmem:[#allocation6 + $0x14] sm:$0xf]
    %v56 = vld [vmem:[#allocation6 + $0x18] sm:$0xf]
    %v57 = vld [vmem:[#allocation6 + $0x1c] sm:$0xf]
    %v58 = vld [vmem:[#allocation6 + $0x20] sm:$0xf]
    %v59 = vld [vmem:[#allocation6 + $0x24] sm:$0xf]
    %v60 = vld [vmem:[#allocation6 + $0x28] sm:$0xf]
    %v61 = vld [vmem:[#allocation6 + $0x2c] sm:$0xf]
    %v62 = vld [vmem:[#allocation6 + $0x30] sm:$0xf]
    %v63 = vld [vmem:[#allocation6 + $0x34] sm:$0xf]
    %v64 = vld [vmem:[#allocation6 + $0x38] sm:$0xf]
    %v65 = vld [vmem:[#allocation6 + $0x3c] sm:$0xf]
    %v66 = vld [vmem:[%s4] sm:$0x1]
    %v68 = vlaneseq
    %v69 = vshrl.u32 %v68, 7
    %v70 = vsub.s32 0, %v69
    %v71 = vrot.slane %v66, %v70
    %v89 = vunpack.c.l.b16 %v50
    %v90 = vunpack.c.l.b16 %v51
    %v91 = vunpack.c.l.b16 %v52
    %v92 = vunpack.c.l.b16 %v53
    %v93 = vunpack.c.l.b16 %v54
    %v94 = vunpack.c.l.b16 %v55
    %v95 = vunpack.c.l.b16 %v56
    %v96 = vunpack.c.l.b16 %v57
    %v97 = vunpack.c.l.b16 %v58
    %v98 = vunpack.c.l.b16 %v59
    %v99 = vunpack.c.l.b16 %v60
    %v100 = vunpack.c.l.b16 %v61
    %v101 = vunpack.c.l.b16 %v62
    %v102 = vunpack.c.l.b16 %v63
    %v103 = vunpack.c.l.b16 %v64
    %v104 = vunpack.c.l.b16 %v65
    %v105 = vpack.c.b16 %v90, %v89
    %v106 = vpack.c.b16 %v92, %v91
    %v107 = vpack.c.b16 %v94, %v93
    %v108 = vpack.c.b16 %v96, %v95
    %v109 = vpack.c.b16 %v98, %v97
    %v110 = vpack.c.b16 %v100, %v99
    %v111 = vpack.c.b16 %v102, %v101
    %v112 = vpack.c.b16 %v104, %v103
    %121 = vmatprep.subr.bf16.mxu0 0
    %122 = vmatpush1.bf16.msra.mxu0 %v105
    %123 = vmatprep.subr.bf16.mxu0 0
    %124 = vmatpush1.bf16.msra.mxu0 %v106
    %125 = vmatprep.subr.bf16.mxu0 0
    %126 = vmatpush1.bf16.msra.mxu0 %v107
    %127 = vmatprep.subr.bf16.mxu0 0
    %128 = vmatpush1.bf16.msra.mxu0 %v108
    %129 = vmatprep.subr.bf16.mxu0 0
    %130 = vmatpush1.bf16.msra.mxu0 %v109
    %131 = vmatprep.subr.bf16.mxu0 0
    %132 = vmatpush1.bf16.msra.mxu0 %v110
    %133 = vmatprep.subr.bf16.mxu0 0
    %134 = vmatpush1.bf16.msra.mxu0 %v111
    %135 = vmatprep.subr.bf16.mxu0 0
    %136 = vmatpush1.bf16.msra.mxu0 %v112
    %137 = vmatprep.subr.bf16.mxu0 0
    %138 = vmatpush1.bf16.msra.mxu0 0
    %139 = vmatprep.subr.bf16.mxu0 0
    %140 = vmatpush1.bf16.msra.mxu0 0
    %141 = vmatprep.subr.bf16.mxu0 0
    %142 = vmatpush1.bf16.msra.mxu0 0
    %143 = vmatprep.subr.bf16.mxu0 0
    %144 = vmatpush1.bf16.msra.mxu0 0
    %145 = vmatprep.subr.bf16.mxu0 0
    %146 = vmatpush1.bf16.msra.mxu0 0
    %147 = vmatprep.subr.bf16.mxu0 0
    %148 = vmatpush1.bf16.msra.mxu0 0
    %149 = vmatprep.subr.bf16.mxu0 0
    %150 = vmatpush1.bf16.msra.mxu0 0
    %151 = vmatprep.subr.bf16.mxu0 0
    %152 = vmatpush1.bf16.msra.mxu0 0
    %153 = vmatprep.mubr.bf16.mxu0 0
    %154 = vmatmul.mubr.bf16.gmra.mrb[0].mxu0 %v49
    %v155 = vpop.f32.mrb[0].mxu0
    %v156 = vadd.f32 %v71, %v155
    %v157 = vpop.f32.mrb[0].mxu0
    %v158 = vpop.f32.mrb[0].mxu0
    %v159 = vpop.f32.mrb[0].mxu0
    %160 = vdwg.mxu0
    %s161 = sld [smem:[#allocation2]]
    %v162 = vld [vmem:[%s3] sm:$0x1]
    %v163 = vstv %s161
    %v164 = vmul.f32 %v163, %v162
    %v165 = vadd.f32 %v156, %v164
    %s166 = sld [smem:[#allocation2 + $0x1]]
    %v167 = vld [vmem:[%s3 + $0x1] sm:$0x1]
    %v168 = vstv %s166
    %v169 = vmul.f32 %v168, %v167
    %v170 = vadd.f32 %v165, %v169
    %s171 = sld [smem:[#allocation2 + $0x2]]
    %v172 = vld [vmem:[%s3 + $0x2] sm:$0x1]
    %v173 = vstv %s171
    %v174 = vmul.f32 %v173, %v172
    %v175 = vadd.f32 %v170, %v174
    %176 = vst [vmem:[#allocation7] sm:$0x1] %v175
    %s177 = sld [smem:[#allocation2 + $0x80]]
    %v178 = vld [vmem:[%s3] sm:$0x1]
    %v179 = vstv %s177
    %v180 = vmul.f32 %v179, %v178
    %v182 = vrot.slane %v180, 7
    %v184 = vadd.f32 %v156, %v182
    %s185 = sld [smem:[#allocation2 + $0x81]]
    %v186 = vld [vmem:[%s3 + $0x1] sm:$0x1]
    %v187 = vstv %s185
    %v188 = vmul.f32 %v187, %v186
    %v190 = vrot.slane %v188, 7
    %v192 = vadd.f32 %v184, %v190
    %s193 = sld [smem:[#allocation2 + $0x82]]
    %v194 = vld [vmem:[%s3 + $0x2] sm:$0x1]
    %v195 = vstv %s193
    %v196 = vmul.f32 %v195, %v194
    %v198 = vrot.slane %v196, 7
    %v200 = vadd.f32 %v192, %v198
    %201 = vst [vmem:[#allocation7] sm:$0x2] %v200
    %s202 = sld [smem:[#allocation2 + $0x100]]
    %v203 = vld [vmem:[%s3] sm:$0x1]
    %v204 = vstv %s202
    %v205 = vmul.f32 %v204, %v203
    %v207 = vrot.slane %v205, 6
    %v209 = vadd.f32 %v156, %v207
    %s210 = sld [smem:[#allocation2 + $0x101]]
    %v211 = vld [vmem:[%s3 + $0x1] sm:$0x1]
    %v212 = vstv %s210
    %v213 = vmul.f32 %v212, %v211
    %v215 = vrot.slane %v213, 6
    %v217 = vadd.f32 %v209, %v215
    %s218 = sld [smem:[#allocation2 + $0x102]]
    %v219 = vld [vmem:[%s3 + $0x2] sm:$0x1]
    %v220 = vstv %s218
    %v221 = vmul.f32 %v220, %v219
    %v223 = vrot.slane %v221, 6
    %v225 = vadd.f32 %v217, %v223
    %226 = vst [vmem:[#allocation7] sm:$0x4] %v225
    %s227 = sld [smem:[#allocation2 + $0x180]]
    %v228 = vld [vmem:[%s3] sm:$0x1]
    %v229 = vstv %s227
    %v230 = vmul.f32 %v229, %v228
    %v232 = vrot.slane %v230, 5
    %v234 = vadd.f32 %v156, %v232
    %s235 = sld [smem:[#allocation2 + $0x181]]
    %v236 = vld [vmem:[%s3 + $0x1] sm:$0x1]
    %v237 = vstv %s235
    %v238 = vmul.f32 %v237, %v236
    %v240 = vrot.slane %v238, 5
    %v242 = vadd.f32 %v234, %v240
    %s243 = sld [smem:[#allocation2 + $0x182]]
    %v244 = vld [vmem:[%s3 + $0x2] sm:$0x1]
    %v245 = vstv %s243
    %v246 = vmul.f32 %v245, %v244
    %v248 = vrot.slane %v246, 5
    %v250 = vadd.f32 %v242, %v248
    %251 = vst [vmem:[#allocation7] sm:$0x8] %v250
    %s252 = sld [smem:[#allocation2 + $0x200]]
    %v253 = vld [vmem:[%s3] sm:$0x1]
    %v254 = vstv %s252
    %v255 = vmul.f32 %v254, %v253
    %v257 = vrot.slane %v255, 4
    %v259 = vadd.f32 %v156, %v257
    %s260 = sld [smem:[#allocation2 + $0x201]]
    %v261 = vld [vmem:[%s3 + $0x1] sm:$0x1]
    %v262 = vstv %s260
    %v263 = vmul.f32 %v262, %v261
    %v265 = vrot.slane %v263, 4
    %v267 = vadd.f32 %v259, %v265
    %s268 = sld [smem:[#allocation2 + $0x202]]
    %v269 = vld [vmem:[%s3 + $0x2] sm:$0x1]
    %v270 = vstv %s268
    %v271 = vmul.f32 %v270, %v269
    %v273 = vrot.slane %v271, 4
    %v275 = vadd.f32 %v267, %v273
    %276 = vst [vmem:[#allocation7] sm:$0x10] %v275
    %s277 = sld [smem:[#allocation2 + $0x280]]
    %v278 = vld [vmem:[%s3] sm:$0x1]
    %v279 = vstv %s277
    %v280 = vmul.f32 %v279, %v278
    %v282 = vrot.slane %v280, 3
    %v284 = vadd.f32 %v156, %v282
    %s285 = sld [smem:[#allocation2 + $0x281]]
    %v286 = vld [vmem:[%s3 + $0x1] sm:$0x1]
    %v287 = vstv %s285
    %v288 = vmul.f32 %v287, %v286
    %v290 = vrot.slane %v288, 3
    %v292 = vadd.f32 %v284, %v290
    %s293 = sld [smem:[#allocation2 + $0x282]]
    %v294 = vld [vmem:[%s3 + $0x2] sm:$0x1]
    %v295 = vstv %s293
    %v296 = vmul.f32 %v295, %v294
    %v298 = vrot.slane %v296, 3
    %v300 = vadd.f32 %v292, %v298
    %301 = vst [vmem:[#allocation7] sm:$0x20] %v300
    %s302 = sld [smem:[#allocation2 + $0x300]]
    %v303 = vld [vmem:[%s3] sm:$0x1]
    %v304 = vstv %s302
    %v305 = vmul.f32 %v304, %v303
    %v307 = vrot.slane %v305, 2
    %v309 = vadd.f32 %v156, %v307
    %s310 = sld [smem:[#allocation2 + $0x301]]
    %v311 = vld [vmem:[%s3 + $0x1] sm:$0x1]
    %v312 = vstv %s310
    %v313 = vmul.f32 %v312, %v311
    %v315 = vrot.slane %v313, 2
    %v317 = vadd.f32 %v309, %v315
    %s318 = sld [smem:[#allocation2 + $0x302]]
    %v319 = vld [vmem:[%s3 + $0x2] sm:$0x1]
    %v320 = vstv %s318
    %v321 = vmul.f32 %v320, %v319
    %v323 = vrot.slane %v321, 2
    %v325 = vadd.f32 %v317, %v323
    %326 = vst [vmem:[#allocation7] sm:$0x40] %v325
    %s327 = sld [smem:[#allocation2 + $0x380]]
    %v328 = vld [vmem:[%s3] sm:$0x1]
    %v329 = vstv %s327
    %v330 = vmul.f32 %v329, %v328
    %v332 = vrot.slane %v330, 1
    %v334 = vadd.f32 %v156, %v332
    %s335 = sld [smem:[#allocation2 + $0x381]]
    %v336 = vld [vmem:[%s3 + $0x1] sm:$0x1]
    %v337 = vstv %s335
    %v338 = vmul.f32 %v337, %v336
    %v340 = vrot.slane %v338, 1
    %v342 = vadd.f32 %v334, %v340
    %s343 = sld [smem:[#allocation2 + $0x382]]
    %v344 = vld [vmem:[%s3 + $0x2] sm:$0x1]
    %v345 = vstv %s343
    %v346 = vmul.f32 %v345, %v344
    %v348 = vrot.slane %v346, 1
    %v350 = vadd.f32 %v342, %v348
    %351 = vst [vmem:[#allocation7] sm:$0x80] %v350
    // Predicated region
    $region30: #{tpu_custom_call.1} parent=1 // pred_check
      _
    $region31: #{tpu_custom_call.1} parent=1 // pred_check_branch
      %353 = sbr.rel (0) target = $region33
    $region32: #{tpu_custom_call.1} parent=1 // pred_region
      %s355 = ssub.s32 128, 128
      %356 = vsyncadd [#allocation4], %s355
      %s358 = sshll.u32 [#allocation7], 4
      %s359 = int_to_ptr.vmem [resolvable:$true] %s358
      %361 = dma.vmem_to_hbm [thread:$0]  %s359, 128, %s5, [#allocation4]
    $region33: #{tpu_custom_call.1} parent=1 // pred_fallthru
      _
    // Predicated region
    $region34: #{tpu_custom_call.1} parent=1 // pred_check
      _
    $region35: #{tpu_custom_call.1} parent=1 // pred_check_branch
      %363 = sbr.rel (0) target = $region37
    $region36: #{tpu_custom_call.1} parent=1 // pred_region
      %364 = dma.done [#allocation4], 128
    $region37: #{tpu_custom_call.1} parent=1 // pred_fallthru
      _
    %365 = vsyncpa [#allocation3], 1
    %366 = vsyncpa [#allocation4], 1
    %367 = vsyncpa [#allocation5], 1

</llo_original>
